<compile_context>
chip_gen: v7x
topology: tpu7x:2x2x1
jax: 0.10.0
libtpu: 0.0.40
codegen_flags: <defaults>
</compile_context>

<pallas_src>
import functools
import math

import jax
import jax.numpy as jnp
from jax import lax
from jax.experimental import pallas as pl
from jax.experimental.pallas import tpu as pltpu

EPS = 1e-5           # BatchNorm2d default eps
LEAKY_SLOPE = 0.2    # F.leaky_relu(x, 0.2)
NHIDDEN = 128        # SPADE nhidden


# ----------------------------------------------------------------------------
# Pallas kernels
# ----------------------------------------------------------------------------

def _matmul_bias_kernel(x_ref, w_ref, b_ref, o_ref, *, relu):
    # x: (1, TM, K), w: (K, Cout), b: (1, Cout), o: (1, TM, Cout)
    acc = jnp.dot(x_ref[0], w_ref[...], preferred_element_type=jnp.float32)
    acc = acc + b_ref[...]
    if relu:
        acc = jnp.maximum(acc, 0.0)
    o_ref[0] = acc


def _bn_stats_kernel(x_ref, mean_ref, var_ref, *, count):
    # Accumulate sum / sum-of-squares over the batch grid axis (arbitrary);
    # finalize to (mean, biased var) on the last step.
    i = pl.program_id(0)

    @pl.when(i == 0)
    def _():
        mean_ref[...] = jnp.zeros_like(mean_ref)
        var_ref[...] = jnp.zeros_like(var_ref)

    x = x_ref[0]                                       # (HW, C)
    mean_ref[...] += jnp.sum(x, axis=0, keepdims=True)
    var_ref[...] += jnp.sum(x * x, axis=0, keepdims=True)

    @pl.when(i == pl.num_programs(0) - 1)
    def _():
        m = mean_ref[...] * (1.0 / count)
        mean_ref[...] = m
        var_ref[...] = var_ref[...] * (1.0 / count) - m * m


def _mod_shortcut_kernel(x_ref, mean_ref, var_ref, gb_ref, ws_ref,
                         h0_ref, xs_ref, *, nc, off0, offs):
    # Fused: BN-normalize x once, apply norm_0 modulation (+leaky) -> h0,
    # apply norm_s modulation (no activation) and the 1x1 conv_s matmul -> x_s.
    inv = lax.rsqrt(var_ref[...] + EPS)                # (1, nc)
    xn = (x_ref[0] - mean_ref[...]) * inv              # (HW, nc)
    gb = gb_ref[0]                                     # (HW, gb_cols)

    g0 = gb[:, off0:off0 + nc]
    b0 = gb[:, off0 + nc:off0 + 2 * nc]
    h0 = xn * (1.0 + g0) + b0
    h0_ref[0] = jnp.where(h0 >= 0.0, h0, LEAKY_SLOPE * h0)

    gs = gb[:, offs:offs + nc]
    bs = gb[:, offs + nc:offs + 2 * nc]
    hs = xn * (1.0 + gs) + bs
    xs_ref[0] = jnp.dot(hs, ws_ref[...], preferred_element_type=jnp.float32)


def _mod_kernel(x_ref, mean_ref, var_ref, gb_ref, o_ref, *, nc, off, leaky):
    inv = lax.rsqrt(var_ref[...] + EPS)
    xn = (x_ref[0] - mean_ref[...]) * inv
    gb = gb_ref[0]
    g = gb[:, off:off + nc]
    b = gb[:, off + nc:off + 2 * nc]
    out = xn * (1.0 + g) + b
    if leaky:
        out = jnp.where(out >= 0.0, out, LEAKY_SLOPE * out)
    o_ref[0] = out


def _conv_stats_kernel(x_ref, w_ref, b_ref, o_ref, mean_ref, var_ref, *, count):
    # conv (as single matmul) + bias, with BN sum/sumsq accumulation fused
    # into the epilogue (stats are needed by the following SPADE).
    i = pl.program_id(0)
    acc = jnp.dot(x_ref[0], w_ref[...], preferred_element_type=jnp.float32)
    acc = acc + b_ref[...]
    o_ref[0] = acc

    @pl.when(i == 0)
    def _():
        mean_ref[...] = jnp.zeros_like(mean_ref)
        var_ref[...] = jnp.zeros_like(var_ref)

    mean_ref[...] += jnp.sum(acc, axis=0, keepdims=True)
    var_ref[...] += jnp.sum(acc * acc, axis=0, keepdims=True)

    @pl.when(i == pl.num_programs(0) - 1)
    def _():
        m = mean_ref[...] * (1.0 / count)
        mean_ref[...] = m
        var_ref[...] = var_ref[...] * (1.0 / count) - m * m


def _conv_add_kernel(x_ref, w_ref, b_ref, r_ref, o_ref):
    # conv (single matmul) + bias + residual add fused.
    acc = jnp.dot(x_ref[0], w_ref[...], preferred_element_type=jnp.float32)
    o_ref[0] = acc + b_ref[...] + r_ref[0]


# ----------------------------------------------------------------------------
# Pallas wrappers
# ----------------------------------------------------------------------------

def _choose_tile(hw, cap):
    # Largest divisor of hw that is <= cap and a multiple of 8 (else full hw).
    if hw <= cap:
        return hw
    for t in range(cap, 7, -1):
        if hw % t == 0 and t % 8 == 0:
            return t
    return hw


def matmul_bias(x, w, b, *, relu=False, row_cap=2048):
    # x: (N, HW, K); w: (K, Cout); b: (1, Cout) -> (N, HW, Cout)
    n, hw, k = x.shape
    cout = w.shape[1]
    tm = _choose_tile(hw, row_cap)
    grid = (n, hw // tm)
    kern = functools.partial(_matmul_bias_kernel, relu=relu)
    return pl.pallas_call(
        kern,
        out_shape=jax.ShapeDtypeStruct((n, hw, cout), jnp.float32),
        grid=grid,
        in_specs=[
            pl.BlockSpec((1, tm, k), lambda i, j: (i, j, 0)),
            pl.BlockSpec((k, cout), lambda i, j: (0, 0)),
            pl.BlockSpec((1, cout), lambda i, j: (0, 0)),
        ],
        out_specs=pl.BlockSpec((1, tm, cout), lambda i, j: (i, j, 0)),
        compiler_params=pltpu.CompilerParams(
            dimension_semantics=("parallel", "parallel")),
    )(x, w, b)


def bn_stats(x_flat):
    # x: (N, HW, C) -> (mean, biased var), each (1, C)
    n, hw, c = x_flat.shape
    kern = functools.partial(_bn_stats_kernel, count=float(n * hw))
    return pl.pallas_call(
        kern,
        out_shape=(jax.ShapeDtypeStruct((1, c), jnp.float32),
                   jax.ShapeDtypeStruct((1, c), jnp.float32)),
        grid=(n,),
        in_specs=[pl.BlockSpec((1, hw, c), lambda i: (i, 0, 0))],
        out_specs=(pl.BlockSpec((1, c), lambda i: (0, 0)),
                   pl.BlockSpec((1, c), lambda i: (0, 0))),
        compiler_params=pltpu.CompilerParams(dimension_semantics=("arbitrary",)),
    )(x_flat)


def modulate_and_shortcut(xf, mean, var, gb, w_s, *, nc, off0, offs):
    n, hw, _ = xf.shape
    gbc = gb.shape[2]
    fout = w_s.shape[1]
    kern = functools.partial(_mod_shortcut_kernel, nc=nc, off0=off0, offs=offs)
    return pl.pallas_call(
        kern,
        out_shape=(jax.ShapeDtypeStruct((n, hw, nc), jnp.float32),
                   jax.ShapeDtypeStruct((n, hw, fout), jnp.float32)),
        grid=(n,),
        in_specs=[
            pl.BlockSpec((1, hw, nc), lambda i: (i, 0, 0)),
            pl.BlockSpec((1, nc), lambda i: (0, 0)),
            pl.BlockSpec((1, nc), lambda i: (0, 0)),
            pl.BlockSpec((1, hw, gbc), lambda i: (i, 0, 0)),
            pl.BlockSpec((nc, fout), lambda i: (0, 0)),
        ],
        out_specs=(pl.BlockSpec((1, hw, nc), lambda i: (i, 0, 0)),
                   pl.BlockSpec((1, hw, fout), lambda i: (i, 0, 0))),
        compiler_params=pltpu.CompilerParams(dimension_semantics=("parallel",)),
    )(xf, mean, var, gb, w_s)


def modulate(xf, mean, var, gb, *, nc, off, leaky):
    n, hw, _ = xf.shape
    gbc = gb.shape[2]
    kern = functools.partial(_mod_kernel, nc=nc, off=off, leaky=leaky)
    return pl.pallas_call(
        kern,
        out_shape=jax.ShapeDtypeStruct((n, hw, nc), jnp.float32),
        grid=(n,),
        in_specs=[
            pl.BlockSpec((1, hw, nc), lambda i: (i, 0, 0)),
            pl.BlockSpec((1, nc), lambda i: (0, 0)),
            pl.BlockSpec((1, nc), lambda i: (0, 0)),
            pl.BlockSpec((1, hw, gbc), lambda i: (i, 0, 0)),
        ],
        out_specs=pl.BlockSpec((1, hw, nc), lambda i: (i, 0, 0)),
        compiler_params=pltpu.CompilerParams(dimension_semantics=("parallel",)),
    )(xf, mean, var, gb)


def conv_with_stats(taps, w, b):
    # taps: (N, HW, 9*Cin); w: (9*Cin, Cout); b: (1, Cout)
    n, hw, k = taps.shape
    cout = w.shape[1]
    kern = functools.partial(_conv_stats_kernel, count=float(n * hw))
    return pl.pallas_call(
        kern,
        out_shape=(jax.ShapeDtypeStruct((n, hw, cout), jnp.float32),
                   jax.ShapeDtypeStruct((1, cout), jnp.float32),
                   jax.ShapeDtypeStruct((1, cout), jnp.float32)),
        grid=(n,),
        in_specs=[
            pl.BlockSpec((1, hw, k), lambda i: (i, 0, 0)),
            pl.BlockSpec((k, cout), lambda i: (0, 0)),
            pl.BlockSpec((1, cout), lambda i: (0, 0)),
        ],
        out_specs=(pl.BlockSpec((1, hw, cout), lambda i: (i, 0, 0)),
                   pl.BlockSpec((1, cout), lambda i: (0, 0)),
                   pl.BlockSpec((1, cout), lambda i: (0, 0))),
        compiler_params=pltpu.CompilerParams(dimension_semantics=("arbitrary",)),
    )(taps, w, b)


def conv_residual(taps, w, b, res):
    n, hw, k = taps.shape
    cout = w.shape[1]
    return pl.pallas_call(
        _conv_add_kernel,
        out_shape=jax.ShapeDtypeStruct((n, hw, cout), jnp.float32),
        grid=(n,),
        in_specs=[
            pl.BlockSpec((1, hw, k), lambda i: (i, 0, 0)),
            pl.BlockSpec((k, cout), lambda i: (0, 0)),
            pl.BlockSpec((1, cout), lambda i: (0, 0)),
            pl.BlockSpec((1, hw, cout), lambda i: (i, 0, 0)),
        ],
        out_specs=pl.BlockSpec((1, hw, cout), lambda i: (i, 0, 0)),
        compiler_params=pltpu.CompilerParams(dimension_semantics=("parallel",)),
    )(taps, w, b, res)


# ----------------------------------------------------------------------------
# XLA glue: resize, im2col (tap-major channels), weight packing
# ----------------------------------------------------------------------------

def nearest_resize_nhwc(seg, h, w):
    # F.interpolate(mode='nearest'): dst index i -> src index floor(i * in / out)
    n, hs, ws, c = seg.shape
    ih = (jnp.arange(h) * hs) // h
    iw = (jnp.arange(w) * ws) // w
    return seg[:, ih[:, None], iw[None, :], :]


def im2col_flat(x):
    # (N,H,W,C) -> (N, H*W, 9*C); zero-pad=1; channel packing is tap-major:
    # column t*C + ci == shifted-by-tap-t value of channel ci.
    n, h, w, c = x.shape
    xp = jnp.pad(x, ((0, 0), (1, 1), (1, 1), (0, 0)))
    taps = [xp[:, dy:dy + h, dx:dx + w, :] for dy in range(3) for dx in range(3)]
    return jnp.concatenate(taps, axis=-1).reshape(n, h * w, 9 * c)


def pack_block_params(p, fin, fout, semantic_nc):
    """Build fused / matmul-ready weights from the raw per-branch parameters."""
    fmid = min(fin, fout)
    learned = p['learned_shortcut']
    branches = [p['norm_0'], p['norm_1']] + ([p['norm_s']] if learned else [])
    ncs = [fin, fmid] + ([fin] if learned else [])
    nb = len(branches)
    lab = semantic_nc
    ca = NHIDDEN * nb

    # Fused mlp_shared: concat along Cout -> one (9*label_nc, nb*128) matmul.
    w_sh_all = jnp.concatenate(
        [br['w_shared'].reshape(9 * lab, NHIDDEN) for br in branches], axis=1)
    b_sh_all = jnp.concatenate(
        [br['b_shared'] for br in branches]).reshape(1, NHIDDEN * nb)

    # Fused gamma+beta conv for all branches: block-structured (9*nb*128, 2*sum(nc)).
    cols = 2 * sum(ncs)
    w_gb = jnp.zeros((9 * ca, cols), jnp.float32)
    b_gb = jnp.zeros((1, cols), jnp.float32)
    off = 0
    for bidx, (br, nc) in enumerate(zip(branches, ncs)):
        wg = br['w_gamma'].reshape(9, NHIDDEN, nc)
        wb = br['w_beta'].reshape(9, NHIDDEN, nc)
        for t in range(9):
            r0 = t * ca + bidx * NHIDDEN
            w_gb = w_gb.at[r0:r0 + NHIDDEN, off:off + nc].set(wg[t])
            w_gb = w_gb.at[r0:r0 + NHIDDEN, off + nc:off + 2 * nc].set(wb[t])
        b_gb = b_gb.at[0, off:off + nc].set(br['b_gamma'])
        b_gb = b_gb.at[0, off + nc:off + 2 * nc].set(br['b_beta'])
        off += 2 * nc

    packed = dict(p)
    packed.update(
        fin=fin, fmid=fmid, fout=fout, num_branches=nb,
        w_sh_all=w_sh_all, b_sh_all=b_sh_all,
        w_gb_all=w_gb, b_gb_all=b_gb,
        w0_mat=p['w_0'].reshape(9 * fin, fmid), b0_vec=p['b_0'].reshape(1, fmid),
        w1_mat=p['w_1'].reshape(9 * fmid, fout), b1_vec=p['b_1'].reshape(1, fout),
    )
    return packed


# ----------------------------------------------------------------------------
# Module forward
# ----------------------------------------------------------------------------

def spade_resnet_block(params, x_nchw, seg_nchw):
    # SPADEResnetBlock.forward; inputs/outputs are NCHW like PyTorch.
    x = jnp.transpose(x_nchw, (0, 2, 3, 1)).astype(jnp.float32)
    seg = jnp.transpose(seg_nchw, (0, 2, 3, 1)).astype(jnp.float32)
    n, h, w, fin = x.shape
    hw = h * w
    fmid, fout = params['fmid'], params['fout']
    nb = params['num_branches']
    learned = params['learned_shortcut']

    seg_r = nearest_resize_nhwc(seg, h, w)
    taps_seg = im2col_flat(seg_r)                                   # (N, HW, 9*lab)

    # 1) fused mlp_shared for all SPADE branches (+ReLU), lane-dense output.
    actv_all = matmul_bias(taps_seg, params['w_sh_all'], params['b_sh_all'],
                           relu=True, row_cap=2048)                 # (N, HW, nb*128)
    # 2) fused gamma+beta conv for all branches (one K=9*nb*128 matmul).
    taps_actv = im2col_flat(actv_all.reshape(n, h, w, NHIDDEN * nb))
    gb_all = matmul_bias(taps_actv, params['w_gb_all'], params['b_gb_all'],
                         relu=False, row_cap=512)                   # (N, HW, 2*sum(nc))

    xf = x.reshape(n, hw, fin)
    # 3) BN batch stats of x (shared by norm_0 and norm_s: same x, same BN).
    mean_x, var_x = bn_stats(xf)

    off0 = 0
    off1 = 2 * fin
    if learned:
        offs = 2 * fin + 2 * fmid
        # 4) fused: norm_0 modulate (+leaky) and norm_s modulate + 1x1 conv_s.
        h0, x_s = modulate_and_shortcut(xf, mean_x, var_x, gb_all, params['w_s'],
                                        nc=fin, off0=off0, offs=offs)
    else:
        h0 = modulate(xf, mean_x, var_x, gb_all, nc=fin, off=off0, leaky=True)
        x_s = xf

    # 5) conv_0 (single matmul) with BN stats of dx fused into the epilogue.
    taps_h0 = im2col_flat(h0.reshape(n, h, w, fin))
    dx, mean_dx, var_dx = conv_with_stats(taps_h0, params['w0_mat'], params['b0_vec'])

    # 6) norm_1 modulate (+leaky).
    h1 = modulate(dx, mean_dx, var_dx, gb_all, nc=fmid, off=off1, leaky=True)

    # 7) conv_1 (single matmul) + bias + residual add fused.
    taps_h1 = im2col_flat(h1.reshape(n, h, w, fmid))
    out = conv_residual(taps_h1, params['w1_mat'], params['b1_vec'], x_s)

    return jnp.transpose(out.reshape(n, h, w, fout), (0, 3, 1, 2))


# ----------------------------------------------------------------------------
# Deterministic parameter init (synthetic; shapes follow the module __init__)
# ----------------------------------------------------------------------------

def _uniform(key, shape, bound):
    return jax.random.uniform(key, shape, jnp.float32, -bound, bound)


def _conv_params(key, kh, kw, cin, cout, bias=True):
    kw_key, kb_key = jax.random.split(key)
    bound = 1.0 / math.sqrt(kh * kw * cin)
    w = _uniform(kw_key, (kh, kw, cin, cout), bound)     # HWIO
    b = _uniform(kb_key, (cout,), bound) if bias else None
    return w, b


def init_spade_params(key, norm_nc, label_nc, nhidden=NHIDDEN):
    k1, k2, k3 = jax.random.split(key, 3)
    w_sh, b_sh = _conv_params(k1, 3, 3, label_nc, nhidden)
    w_g, b_g = _conv_params(k2, 3, 3, nhidden, norm_nc)
    w_b, b_b = _conv_params(k3, 3, 3, nhidden, norm_nc)
    return dict(w_shared=w_sh, b_shared=b_sh,
                w_gamma=w_g, b_gamma=b_g, w_beta=w_b, b_beta=b_b)


def init_block_params(key, fin, fout, semantic_nc):
    learned = fin != fout
    fmid = min(fin, fout)
    ks = jax.random.split(key, 6)
    p = {'learned_shortcut': learned}
    p['w_0'], p['b_0'] = _conv_params(ks[0], 3, 3, fin, fmid)
    p['w_1'], p['b_1'] = _conv_params(ks[1], 3, 3, fmid, fout)
    p['norm_0'] = init_spade_params(ks[2], fin, semantic_nc)
    p['norm_1'] = init_spade_params(ks[3], fmid, semantic_nc)
    if learned:
        w_s, _ = _conv_params(ks[4], 1, 1, fin, fout, bias=False)
        p['w_s'] = w_s.reshape(fin, fout)
        p['norm_s'] = init_spade_params(ks[5], fin, semantic_nc)
    return p


# ----------------------------------------------------------------------------
# Pure-JAX reference (correctness check)
# ----------------------------------------------------------------------------

def _ref_conv3x3(x, w, b):
    y = lax.conv_general_dilated(x, w, (1, 1), ((1, 1), (1, 1)),
                                 dimension_numbers=('NHWC', 'HWIO', 'NHWC'),
                                 precision=lax.Precision.HIGHEST)
    return y + b[None, None, None, :]


def _ref_spade(x, seg_r, p, leaky):
    m = jnp.mean(x, axis=(0, 1, 2), keepdims=True)
    v = jnp.mean(jnp.square(x - m), axis=(0, 1, 2), keepdims=True)
    xn = (x - m) / jnp.sqrt(v + EPS)
    actv = jnp.maximum(_ref_conv3x3(seg_r, p['w_shared'], p['b_shared']), 0.0)
    gamma = _ref_conv3x3(actv, p['w_gamma'], p['b_gamma'])
    beta = _ref_conv3x3(actv, p['w_beta'], p['b_beta'])
    out = xn * (1.0 + gamma) + beta
    if leaky:
        out = jnp.where(out >= 0.0, out, LEAKY_SLOPE * out)
    return out


def ref_block(params, x_nchw, seg_nchw):
    x = jnp.transpose(x_nchw, (0, 2, 3, 1)).astype(jnp.float32)
    seg = jnp.transpose(seg_nchw, (0, 2, 3, 1)).astype(jnp.float32)
    _, h, w, _ = x.shape
    seg_r = nearest_resize_nhwc(seg, h, w)
    if params['learned_shortcut']:
        hs = _ref_spade(x, seg_r, params['norm_s'], False)
        x_s = jnp.einsum('nhwc,co->nhwo', hs, params['w_s'],
                         precision=lax.Precision.HIGHEST)
    else:
        x_s = x
    hid = _ref_spade(x, seg_r, params['norm_0'], True)
    dx = _ref_conv3x3(hid, params['w_0'], params['b_0'])
    hid = _ref_spade(dx, seg_r, params['norm_1'], True)
    dx = _ref_conv3x3(hid, params['w_1'], params['b_1'])
    return jnp.transpose(x_s + dx, (0, 3, 1, 2))


# ----------------------------------------------------------------------------

if __name__ == "__main__":
    key = jax.random.PRNGKey(0)
    kp, kx, kseg = jax.random.split(key, 3)

    fin, fout, semantic_nc = 4, 8, 3
    N, H, W = 2, 16, 16

    raw = init_block_params(kp, fin, fout, semantic_nc)
    params = pack_block_params(raw, fin, fout, semantic_nc)

    x = jax.random.normal(kx, (N, fin, H, W), jnp.float32)           # NCHW
    seg = jax.random.uniform(kseg, (N, semantic_nc, H // 2, W // 2),
                             jnp.float32)                            # NCHW, upsampled inside

    out = spade_resnet_block(params, x, seg)
    out = jax.block_until_ready(out)
    assert out.shape == (N, fout, H, W)

    ref = ref_block(params, x, seg)
    max_err = float(jnp.max(jnp.abs(out - ref)))
    assert max_err < 2e-3, f"mismatch vs reference: max abs err = {max_err}"

    print("KERNEL_OK")
</pallas_src>

<mosaic_0001>
module attributes {stable_mosaic.version = 11 : i64} {
  func.func @_matmul_bias_kernel(%arg0: i32, %arg1: i32, %arg2: memref<1x256x27xf32, #tpu.memory_space<vmem>>, %arg3: memref<27x384xf32, #tpu.memory_space<vmem>>, %arg4: memref<1x384xf32, #tpu.memory_space<vmem>>, %arg5: memref<1x256x384xf32, #tpu.memory_space<vmem>>) attributes {dimension_semantics = [#tpu.dimension_semantics<parallel>, #tpu.dimension_semantics<parallel>], iteration_bounds = array<i64: 2, 1>, scalar_prefetch = 0 : i64, scratch_operands = 0 : i64, tpu.core_type = #tpu.core_type<tc>, window_params = [{transform_indices = @transform_0, window_bounds = array<i64: 1, 256, 27>}, {pipeline_mode = #tpu.pipeline_mode<synchronous>, transform_indices = @transform_1, window_bounds = array<i64: 27, 384>}, {pipeline_mode = #tpu.pipeline_mode<synchronous>, transform_indices = @transform_2, window_bounds = array<i64: 1, 384>}, {transform_indices = @transform_3, window_bounds = array<i64: 1, 256, 384>}]} {
    %c0 = arith.constant 0 : index
    %c0_0 = arith.constant 0 : index
    %c0_1 = arith.constant 0 : index
    %0 = vector.load %arg2[%c0, %c0_0, %c0_1] : memref<1x256x27xf32, #tpu.memory_space<vmem>>, vector<1x256x27xf32>
    %1 = vector.shape_cast %0 : vector<1x256x27xf32> to vector<256x27xf32>
    %c0_2 = arith.constant 0 : index
    %c0_3 = arith.constant 0 : index
    %2 = vector.load %arg3[%c0_2, %c0_3] : memref<27x384xf32, #tpu.memory_space<vmem>>, vector<27x384xf32>
    %cst = arith.constant dense<0.000000e+00> : vector<256x384xf32>
    %3 = tpu.matmul %1, %2, %cst {dimension_numbers = #tpu.dot_dimension_numbers<[1], [0], [0], [1], [0, 0, 1, 1], [], []>} : vector<256x27xf32>, vector<27x384xf32>, vector<256x384xf32> -> vector<256x384xf32>
    %c0_4 = arith.constant 0 : index
    %c0_5 = arith.constant 0 : index
    %4 = vector.load %arg4[%c0_4, %c0_5] : memref<1x384xf32, #tpu.memory_space<vmem>>, vector<1x384xf32>
    %5 = vector.broadcast %4 : vector<1x384xf32> to vector<256x384xf32>
    %6 = arith.addf %3, %5 : vector<256x384xf32>
    %cst_6 = arith.constant 0.000000e+00 : f32
    %7 = vector.broadcast %cst_6 : f32 to vector<256x384xf32>
    %8 = arith.maximumf %6, %7 : vector<256x384xf32>
    %c0_7 = arith.constant 0 : index
    %c0_8 = arith.constant 0 : index
    %c0_9 = arith.constant 0 : index
    %9 = vector.load %arg5[%c0_7, %c0_8, %c0_9] : memref<1x256x384xf32, #tpu.memory_space<vmem>>, vector<1x256x384xf32>
    %10 = vector.shape_cast %9 : vector<1x256x384xf32> to vector<256x384xf32>
    %11 = vector.shape_cast %8 : vector<256x384xf32> to vector<1x256x384xf32>
    tpu.vector_store %arg5[%c0_7, %c0_8, %c0_9], %11 {strides = array<i32>} : memref<1x256x384xf32, #tpu.memory_space<vmem>>, vector<1x256x384xf32>,
    return
  }
  func.func @transform_0(%arg0: i32, %arg1: i32) -> (i32, i32, i32) {
    %c0_i32 = arith.constant 0 : i32
    %c0_i32_0 = arith.constant 0 : i32
    return %arg0, %arg1, %c0_i32 : i32, i32, i32
  }
  func.func @transform_1(%arg0: i32, %arg1: i32) -> (i32, i32) {
    %c0_i32 = arith.constant 0 : i32
    %c0_i32_0 = arith.constant 0 : i32
    %c0_i32_1 = arith.constant 0 : i32
    return %c0_i32, %c0_i32_0 : i32, i32
  }
  func.func @transform_2(%arg0: i32, %arg1: i32) -> (i32, i32) {
    %c0_i32 = arith.constant 0 : i32
    %c0_i32_0 = arith.constant 0 : i32
    %c0_i32_1 = arith.constant 0 : i32
    return %c0_i32, %c0_i32_0 : i32, i32
  }
  func.func @transform_3(%arg0: i32, %arg1: i32) -> (i32, i32, i32) {
    %c0_i32 = arith.constant 0 : i32
    %c0_i32_0 = arith.constant 0 : i32
    return %arg0, %arg1, %c0_i32 : i32, i32, i32
  }
}

</mosaic_0001>

<llo_original>
// kernel: tpu_custom_call.1
$region0: #{tpu_custom_call.1}
  #allocation0 [shape = 'u32[]', space=smem, size = 0x4, offset = 0x4, fixed_abs, tag = 'smem constant byte address 0x4 - core index']
  #allocation1 [shape = 'u32[144,128]{1,0:T(1,128)}', space=vmem, size = 0x12000, scoped, tag = 'internal scratch']
  %s0 = inlined_call_operand.vmem [shape: f32[2,256,27], index: 0, kind: input, shape index: {}]
  %s1 = inlined_call_operand.vmem [shape: f32[27,384], index: 1, kind: input, shape index: {}]
  %s2 = inlined_call_operand.vmem [shape: f32[1,384], index: 2, kind: input, shape index: {}]
  %s3 = inlined_call_operand.hbm [shape: f32[2,256,384], index: 3, kind: output, shape index: {}]
  %s4 = sld [smem:[#allocation0]]
  $region45: #{tpu_custom_call.1} parent=0
    _
  %s6 = ssub.s32 1, %s4
  %s7 = scalar_select 0, %s6, %s4
  $region1: #{tpu_custom_call.1} parent=0
    #allocation2 [shape = 'u8[786432]{0}', space=vmem, size = 0xc0000, scoped, tag = 'output window, operand 0']
    #allocation3 [shape = 's32[2]{0}', space=sflag, size = 0x8, scoped, tag = 'scoped memory for tpu_custom_call.1']
    %8 = vsyncpa [#allocation3], 0
    %s9 = scalar_lea.sflag [#allocation3], 1
    %10 = vsyncpa %s9, 0
    loop: start=0, step=1, limit=4
    $region2: #{tpu_custom_call.1} parent=1 // loop_pre_header
      _
    $region3: #{tpu_custom_call.1} parent=1 // loop_header
      %s12 = sphi 0, %s16
      %p13 = scmp.ge.s32.totalorder %s12, 4
      %s19 = sphi 0, %s31
      %s20 = sphi 0, %s27
      %s21 = sphi 0, %s19
      %s22 = sphi 0, %s20
      %s23 = sphi 0, %s21
      %s24 = sphi 0, %s22
      %s36 = sphi 0, %s38
      %s39 = sphi 0, %s36
      %s40 = sphi 0, %s39
      %s56 = sphi 0, %s40
      %s60 = sphi 0, %s60
      %s62 = sphi 0, %s60
      %s63 = sphi 0, %s62
      %s77 = sphi 0, %s63
      %s81 = sphi 0, %s81
      %s83 = sphi 0, %s81
      %s84 = sphi 0, %s83
      %s98 = sphi 0, %s84
      %s106 = sphi 0, %s108
      %s109 = sphi 0, %s106
      %s110 = sphi 0, %s109
      %s126 = sphi 0, %s110
    $region4: #{tpu_custom_call.1} parent=1 // loop_header_branch
      %15 = sbr.rel (%p13) target = $region8
    $region5: #{tpu_custom_call.1} parent=1 // loop_body
      %s17 = ssub.s32 %s12, 1
      %s18 = ssub.s32 %s12, 2
      %s25 = sadd.s32 1, %s20
      %p26 = scmp.ge.s32.totalorder %s25, 1
      %s27 = scalar_select %p26, 0, %s25
      %s28 = sadd.s32 1, %s19
      %s29 = scalar_select %p26, %s28, %s19
      %p30 = scmp.ge.s32.totalorder %s29, 2
      %s31 = scalar_select %p30, 0, %s29
      %s32 = ssub.s32 %s19, %s31
      %s33 = ssub.s32 %s20, %s27
      %s34 = sor.u32 %s32, %s33
      %p35 = scmp.eq.s32.totalorder %s34, 0
      %s37 = sadd.s32 %s36, 1
      %s38 = scalar_select %p35, %s36, %s37
      %p41 = pneg %p35
      %p42 = scmp.eq.s32.totalorder %s12, 1
      %p43 = por %p41, %p42
      %p44 = scmp.ne.s32.totalorder %s36, %s39
      %p45 = scmp.eq.s32.totalorder %s12, 0
      %p46 = por %p44, %p45
      %p47 = scmp.ne.s32.totalorder %s36, %s39
      %p48 = scmp.eq.s32.totalorder %s17, 1
      %p49 = por %p47, %p48
      %p50 = scmp.ne.s32.totalorder %s39, %s40
      %p51 = scmp.eq.s32.totalorder %s17, 0
      %p52 = por %p50, %p51
      %p53 = scmp.ne.s32.totalorder %s39, %s40
      %p54 = scmp.eq.s32.totalorder %s18, 1
      %p55 = por %p53, %p54
      %p57 = scmp.ne.s32.totalorder %s40, %s56
      %p58 = scmp.eq.s32.totalorder %s18, 0
      %p59 = por %p57, %p58
      %s61 = sadd.s32 %s60, 1
      %p64 = scmp.eq.s32.totalorder %s12, 1
      %p65 = scmp.ne.s32.totalorder %s60, %s62
      %p66 = scmp.eq.s32.totalorder %s12, 0
      %p67 = por %p65, %p66
      %p68 = scmp.ne.s32.totalorder %s60, %s62
      %p69 = scmp.eq.s32.totalorder %s17, 1
      %p70 = por %p68, %p69
      %p71 = scmp.ne.s32.totalorder %s62, %s63
      %p72 = scmp.eq.s32.totalorder %s17, 0
      %p73 = por %p71, %p72
      %p74 = scmp.ne.s32.totalorder %s62, %s63
      %p75 = scmp.eq.s32.totalorder %s18, 1
      %p76 = por %p74, %p75
      %p78 = scmp.ne.s32.totalorder %s63, %s77
      %p79 = scmp.eq.s32.totalorder %s18, 0
      %p80 = por %p78, %p79
      %s82 = sadd.s32 %s81, 1
      %p85 = scmp.eq.s32.totalorder %s12, 1
      %p86 = scmp.ne.s32.totalorder %s81, %s83
      %p87 = scmp.eq.s32.totalorder %s12, 0
      %p88 = por %p86, %p87
      %p89 = scmp.ne.s32.totalorder %s81, %s83
      %p90 = scmp.eq.s32.totalorder %s17, 1
      %p91 = por %p89, %p90
      %p92 = scmp.ne.s32.totalorder %s83, %s84
      %p93 = scmp.eq.s32.totalorder %s17, 0
      %p94 = por %p92, %p93
      %p95 = scmp.ne.s32.totalorder %s83, %s84
      %p96 = scmp.eq.s32.totalorder %s18, 1
      %p97 = por %p95, %p96
      %p99 = scmp.ne.s32.totalorder %s84, %s98
      %p100 = scmp.eq.s32.totalorder %s18, 0
      %p101 = por %p99, %p100
      %s102 = ssub.s32 %s19, %s31
      %s103 = ssub.s32 %s20, %s27
      %s104 = sor.u32 %s102, %s103
      %p105 = scmp.eq.s32.totalorder %s104, 0
      %s107 = sadd.s32 %s106, 1
      %s108 = scalar_select %p105, %s106, %s107
      %p111 = pneg %p105
      %p112 = scmp.eq.s32.totalorder %s12, 1
      %p113 = por %p111, %p112
      %p114 = scmp.ne.s32.totalorder %s106, %s109
      %p115 = scmp.eq.s32.totalorder %s12, 0
      %p116 = por %p114, %p115
      %p117 = scmp.ne.s32.totalorder %s106, %s109
      %p118 = scmp.eq.s32.totalorder %s17, 1
      %p119 = por %p117, %p118
      %p120 = scmp.ne.s32.totalorder %s109, %s110
      %p121 = scmp.eq.s32.totalorder %s17, 0
      %p122 = por %p120, %p121
      %p123 = scmp.ne.s32.totalorder %s109, %s110
      %p124 = scmp.eq.s32.totalorder %s18, 1
      %p125 = por %p123, %p124
      %p127 = scmp.ne.s32.totalorder %s110, %s126
      %p128 = scmp.eq.s32.totalorder %s18, 0
      %p129 = por %p127, %p128
      %p130 = scmp.le.s32.totalorder 1, %s12
      %p131 = scmp.lt.s32.totalorder %s12, 3
      %p132 = pnand %p130, %p131
      %p133 = pneg %p132
      // Predicated region
      $region9: #{tpu_custom_call.1} parent=5 // pred_check
        _
      $region10: #{tpu_custom_call.1} parent=5 // pred_check_branch
        %135 = sbr.rel (%p132) target = $region12
      $region11: #{tpu_custom_call.1} parent=5 // pred_region
        %s136 = ssub.s32 %s12, 1
        // Predicated region
        $region13: #{tpu_custom_call.1} parent=11 // pred_check
          %p137 = pneg %p73
        $region14: #{tpu_custom_call.1} parent=11 // pred_check_branch
          %139 = sbr.rel (%p137) target = $region16
        $region15: #{tpu_custom_call.1} parent=11 // pred_region
          _
        $region16: #{tpu_custom_call.1} parent=11 // pred_fallthru
          _
        // Predicated region
        $region17: #{tpu_custom_call.1} parent=11 // pred_check
          %p140 = pneg %p94
        $region18: #{tpu_custom_call.1} parent=11 // pred_check_branch
          %142 = sbr.rel (%p140) target = $region20
        $region19: #{tpu_custom_call.1} parent=11 // pred_region
          _
        $region20: #{tpu_custom_call.1} parent=11 // pred_fallthru
          _
      $region12: #{tpu_custom_call.1} parent=5 // pred_fallthru
        _
      %p143 = scmp.lt.s32.totalorder %s12, 2
      // Predicated region
      $region21: #{tpu_custom_call.1} parent=5 // pred_check
        %p144 = pneg %p143
      $region22: #{tpu_custom_call.1} parent=5 // pred_check_branch
        %146 = sbr.rel (%p144) target = $region24
      $region23: #{tpu_custom_call.1} parent=5 // pred_region
        // Predicated region
        $region25: #{tpu_custom_call.1} parent=23 // pred_check
          %p147 = pneg %p46
        $region26: #{tpu_custom_call.1} parent=23 // pred_check_branch
          %149 = sbr.rel (%p147) target = $region28
        $region27: #{tpu_custom_call.1} parent=23 // pred_region
          %s150 = smul.u32 32, %s20
          %p151 = scmp.lt.s32.totalorder %s19, 1
          %s152 = scalar_select %p151, %s19, 1
          %p153 = scmp.lt.s32.totalorder %s150, 31
          %s154 = scalar_select %p153, %s150, 31
          %s155 = smul.addr %s152, 32
          %s156 = sadd.s32 %s154, %s155
          %s157 = smul.addr %s156, 8
          %s158 = scalar_lea.vmem %s0, %s157
          %s159 = smul.u32 32, %s20
        $region28: #{tpu_custom_call.1} parent=23 // pred_fallthru
          _
      $region24: #{tpu_custom_call.1} parent=5 // pred_fallthru
        _
      %p160 = scmp.le.s32.totalorder 1, %s12
      %p161 = scmp.lt.s32.totalorder %s12, 3
      %p162 = pnand %p160, %p161
      %p163 = pneg %p162
      // Predicated region
      $region29: #{tpu_custom_call.1} parent=5 // pred_check
        _
      $region30: #{tpu_custom_call.1} parent=5 // pred_check_branch
        %165 = sbr.rel (%p162) target = $region32
      $region31: #{tpu_custom_call.1} parent=5 // pred_region
        %s166 = ssub.s32 %s12, 1
        %s167 = smul.u32 32, %s22
        %p168 = scmp.lt.s32.totalorder %s21, 1
        %s169 = scalar_select %p168, %s21, 1
        %p170 = scmp.lt.s32.totalorder %s167, 31
        %s171 = scalar_select %p170, %s167, 31
        %s172 = smul.addr %s169, 32
        %s173 = sadd.s32 %s171, %s172
        %s174 = smul.addr %s173, 8
        %s175 = scalar_lea.vmem %s0, %s174
        %p176 = pneg %p52
        %p177 = pneg %p49
        %p178 = pneg %p73
        %p179 = pneg %p70
        %p180 = pneg %p94
        %p181 = pneg %p91
        %p182 = pneg %p122
        %p183 = pneg %p119
        %s184 = sand.u32 %s109, 1
        %s185 = scalar_lea.sflag [#allocation3], %s184
        %s186 = sand.u32 %s109, 1
        %s187 = smul.addr %s186, 768
        %s188 = scalar_lea.vmem [#allocation2], %s187
        %s189 = smul.u32 32, %s22
        %p190 = scmp.lt.s32.totalorder %s21, 1
        %s191 = scalar_select %p190, %s21, 1
        %p192 = scmp.lt.s32.totalorder %s189, 31
        %s193 = scalar_select %p192, %s189, 31
        %s194 = smul.addr %s191, 32
        %s195 = sadd.s32 %s193, %s194
        %s196 = smul.addr %s195, 8
        %s197 = scalar_lea.vmem %s0, %s196
        %s198 = smul.u32 32, %s22
        %s199 = smul.u32 32, %s22
        %v200 = vld [vmem:[%s197] sm:$0xff]
        %v201 = vld [vmem:[%s197 + $0x8] sm:$0xff]
        %v202 = vld [vmem:[%s197 + $0x10] sm:$0xff]
        %v203 = vld [vmem:[%s197 + $0x18] sm:$0xff]
        %v204 = vld [vmem:[%s197 + $0x20] sm:$0xff]
        %v205 = vld [vmem:[%s197 + $0x28] sm:$0xff]
        %v206 = vld [vmem:[%s197 + $0x30] sm:$0xff]
        %v207 = vld [vmem:[%s197 + $0x38] sm:$0xff]
        %v208 = vld [vmem:[%s197 + $0x40] sm:$0xff]
        %v209 = vld [vmem:[%s197 + $0x48] sm:$0xff]
        %v210 = vld [vmem:[%s197 + $0x50] sm:$0xff]
        %v211 = vld [vmem:[%s197 + $0x58] sm:$0xff]
        %v212 = vld [vmem:[%s197 + $0x60] sm:$0xff]
        %v213 = vld [vmem:[%s197 + $0x68] sm:$0xff]
        %v214 = vld [vmem:[%s197 + $0x70] sm:$0xff]
        %v215 = vld [vmem:[%s197 + $0x78] sm:$0xff]
        %v216 = vld [vmem:[%s197 + $0x80] sm:$0xff]
        %v217 = vld [vmem:[%s197 + $0x88] sm:$0xff]
        %v218 = vld [vmem:[%s197 + $0x90] sm:$0xff]
        %v219 = vld [vmem:[%s197 + $0x98] sm:$0xff]
        %v220 = vld [vmem:[%s197 + $0xa0] sm:$0xff]
        %v221 = vld [vmem:[%s197 + $0xa8] sm:$0xff]
        %v222 = vld [vmem:[%s197 + $0xb0] sm:$0xff]
        %v223 = vld [vmem:[%s197 + $0xb8] sm:$0xff]
        %v224 = vld [vmem:[%s197 + $0xc0] sm:$0xff]
        %v225 = vld [vmem:[%s197 + $0xc8] sm:$0xff]
        %v226 = vld [vmem:[%s197 + $0xd0] sm:$0xff]
        %v227 = vld [vmem:[%s197 + $0xd8] sm:$0xff]
        %v228 = vld [vmem:[%s197 + $0xe0] sm:$0xff]
        %v229 = vld [vmem:[%s197 + $0xe8] sm:$0xff]
        %v230 = vld [vmem:[%s197 + $0xf0] sm:$0xff]
        %v231 = vld [vmem:[%s197 + $0xf8] sm:$0xff]
        %v232 = vld [vmem:[%s1] sm:$0xff]
        %v233 = vld [vmem:[%s1 + $0x8] sm:$0xff]
        %v234 = vld [vmem:[%s1 + $0x10] sm:$0xff]
        %v235 = vld [vmem:[%s1 + $0x18] sm:$0xff]
        %v236 = vld [vmem:[%s1 + $0x20] sm:$0xff]
        %v237 = vld [vmem:[%s1 + $0x28] sm:$0xff]
        %v238 = vld [vmem:[%s1 + $0x30] sm:$0xff]
        %v239 = vld [vmem:[%s1 + $0x38] sm:$0xff]
        %v240 = vld [vmem:[%s1 + $0x40] sm:$0xff]
        %v241 = vld [vmem:[%s1 + $0x48] sm:$0x7]
        %v242 = vld [vmem:[%s1 + $0x50] sm:$0x7]
        %v243 = vld [vmem:[%s1 + $0x58] sm:$0x7]
        %v244 = vld [vmem:[%s2] sm:$0x7]
        %v246 = vlaneseq
        %v247 = vshrl.u32 %v246, 7
        %v248 = vsub.s32 0, %v247
        %v249 = vrot.slane %v244, %v248
        %v250 = vlaneseq
        %v251 = vshrl.u32 %v250, 7
        %v252 = vsub.s32 1, %v251
        %v253 = vrot.slane %v244, %v252
        %v254 = vlaneseq
        %v255 = vshrl.u32 %v254, 7
        %v256 = vsub.s32 2, %v255
        %v257 = vrot.slane %v244, %v256
        %vm261 = vcmask 220160
        %v263 = vsel %vm261, %v200, 0
        %v266 = vsel %vm261, %v201, 0
        %v269 = vsel %vm261, %v202, 0
        %v272 = vsel %vm261, %v203, 0
        %v275 = vsel %vm261, %v204, 0
        %v278 = vsel %vm261, %v205, 0
        %v281 = vsel %vm261, %v206, 0
        %v284 = vsel %vm261, %v207, 0
        %v287 = vsel %vm261, %v208, 0
        %v290 = vsel %vm261, %v209, 0
        %v293 = vsel %vm261, %v210, 0
        %v296 = vsel %vm261, %v211, 0
        %v299 = vsel %vm261, %v212, 0
        %v302 = vsel %vm261, %v213, 0
        %v305 = vsel %vm261, %v214, 0
        %v308 = vsel %vm261, %v215, 0
        %v311 = vsel %vm261, %v216, 0
        %v314 = vsel %vm261, %v217, 0
        %v317 = vsel %vm261, %v218, 0
        %v320 = vsel %vm261, %v219, 0
        %v323 = vsel %vm261, %v220, 0
        %v326 = vsel %vm261, %v221, 0
        %v329 = vsel %vm261, %v222, 0
        %v332 = vsel %vm261, %v223, 0
        %v335 = vsel %vm261, %v224, 0
        %v338 = vsel %vm261, %v225, 0
        %v341 = vsel %vm261, %v226, 0
        %v344 = vsel %vm261, %v227, 0
        %v347 = vsel %vm261, %v228, 0
        %v350 = vsel %vm261, %v229, 0
        %v353 = vsel %vm261, %v230, 0
        %v356 = vsel %vm261, %v231, 0
        %vm358 = vcmask 1042432
        %v360 = vsel %vm358, %v241, 0
        %v363 = vsel %vm358, %v242, 0
        %v366 = vsel %vm358, %v243, 0
        %368 = vmatprep.subr.mxu0 %v233
        %369 = vmatpush1.msra.mxu0 %v232
        %370 = vmatprep.subr.mxu0 %v236
        %371 = vmatpush1.msra.mxu0 %v235
        %372 = vmatprep.subr.mxu0 %v239
        %373 = vmatpush1.msra.mxu0 %v238
        %374 = vmatprep.subr.mxu0 %v363
        %375 = vmatpush1.msra.mxu0 %v360
        %376 = vmatprep.subr.mxu0 0.0
        %377 = vmatpush1.msra.mxu0 0.0
        %378 = vmatprep.subr.mxu0 0.0
        %379 = vmatpush1.msra.mxu0 0.0
        %380 = vmatprep.subr.mxu0 0.0
        %381 = vmatpush1.msra.mxu0 0.0
        %382 = vmatprep.subr.mxu0 0.0
        %383 = vmatpush1.msra.mxu0 0.0
        %384 = vmatprep.subr.mxu0 0.0
        %385 = vmatpush1.msra.mxu0 0.0
        %386 = vmatprep.subr.mxu0 0.0
        %387 = vmatpush1.msra.mxu0 0.0
        %388 = vmatprep.subr.mxu0 0.0
        %389 = vmatpush1.msra.mxu0 0.0
        %390 = vmatprep.subr.mxu0 0.0
        %391 = vmatpush1.msra.mxu0 0.0
        %392 = vmatprep.subr.mxu0 0.0
        %393 = vmatpush1.msra.mxu0 0.0
        %394 = vmatprep.subr.mxu0 0.0
        %395 = vmatpush1.msra.mxu0 0.0
        %396 = vmatprep.subr.mxu0 0.0
        %397 = vmatpush1.msra.mxu0 0.0
        %398 = vmatprep.subr.mxu0 0.0
        %399 = vmatpush1.msra.mxu0 0.0
        %400 = vmatprep.subr.mxu0 0.0
        %401 = vmatpush1.msra.mxu0 0.0
        %402 = vmatprep.subr.mxu0 0.0
        %403 = vmatpush1.msra.mxu0 0.0
        %404 = vmatprep.subr.mxu0 0.0
        %405 = vmatpush1.msra.mxu0 0.0
        %406 = vmatprep.subr.mxu0 0.0
        %407 = vmatpush1.msra.mxu0 0.0
        %408 = vmatprep.subr.mxu0 0.0
        %409 = vmatpush1.msra.mxu0 0.0
        %410 = vmatprep.subr.mxu0 0.0
        %411 = vmatpush1.msra.mxu0 0.0
        %412 = vmatprep.subr.mxu0 0.0
        %413 = vmatpush1.msra.mxu0 0.0
        %414 = vmatprep.subr.mxu0 0.0
        %415 = vmatpush1.msra.mxu0 0.0
        %416 = vmatprep.subr.mxu0 0.0
        %417 = vmatpush1.msra.mxu0 0.0
        %418 = vmatprep.subr.mxu0 0.0
        %419 = vmatpush1.msra.mxu0 0.0
        %420 = vmatprep.subr.mxu0 0.0
        %421 = vmatpush1.msra.mxu0 0.0
        %422 = vmatprep.subr.mxu0 0.0
        %423 = vmatpush1.msra.mxu0 0.0
        %424 = vmatprep.subr.mxu0 0.0
        %425 = vmatpush1.msra.mxu0 0.0
        %426 = vmatprep.subr.mxu0 0.0
        %427 = vmatpush1.msra.mxu0 0.0
        %428 = vmatprep.subr.mxu0 0.0
        %429 = vmatpush1.msra.mxu0 0.0
        %430 = vmatprep.subr.mxu0 0.0
        %431 = vmatpush1.msra.mxu0 0.0
        %432 = vmatprep.mubr.f32.mxu0 0.0
        %433 = vmatmul.mubr.f32.gmra.mrb[0].mxu0 %v263
        %v434 = vpop.f32.mrb[0].mxu0
        %v435 = vadd.f32 %v249, %v434
        %v436 = vpop.f32.mrb[0].mxu0
        %v437 = vadd.f32 %v253, %v436
        %438 = vmatprep.mubr.f32.mxu0 0.0
        %439 = vmatmul.mubr.f32.gmra.mrb[0].mxu0 %v266
        %v440 = vpop.f32.mrb[0].mxu0
        %v441 = vadd.f32 %v249, %v440
        %v442 = vpop.f32.mrb[0].mxu0
        %v443 = vadd.f32 %v253, %v442
        %444 = vmatprep.mubr.f32.mxu0 0.0
        %445 = vmatmul.mubr.f32.gmra.mrb[0].mxu0 %v269
        %v446 = vpop.f32.mrb[0].mxu0
        %v447 = vadd.f32 %v249, %v446
        %v448 = vpop.f32.mrb[0].mxu0
        %v449 = vadd.f32 %v253, %v448
        %450 = vmatprep.mubr.f32.mxu0 0.0
        %451 = vmatmul.mubr.f32.gmra.mrb[0].mxu0 %v272
        %v452 = vpop.f32.mrb[0].mxu0
        %v453 = vadd.f32 %v249, %v452
        %v454 = vpop.f32.mrb[0].mxu0
        %v455 = vadd.f32 %v253, %v454
        %456 = vmatprep.mubr.f32.mxu0 0.0
        %457 = vmatmul.mubr.f32.gmra.mrb[0].mxu0 %v275
        %v458 = vpop.f32.mrb[0].mxu0
        %v459 = vadd.f32 %v249, %v458
        %v460 = vpop.f32.mrb[0].mxu0
        %v461 = vadd.f32 %v253, %v460
        %462 = vmatprep.mubr.f32.mxu0 0.0
        %463 = vmatmul.mubr.f32.gmra.mrb[0].mxu0 %v278
        %v464 = vpop.f32.mrb[0].mxu0
        %v465 = vadd.f32 %v249, %v464
        %v466 = vpop.f32.mrb[0].mxu0
        %v467 = vadd.f32 %v253, %v466
        %468 = vmatprep.mubr.f32.mxu0 0.0
        %469 = vmatmul.mubr.f32.gmra.mrb[0].mxu0 %v281
        %v470 = vpop.f32.mrb[0].mxu0
        %v471 = vadd.f32 %v249, %v470
        %v472 = vpop.f32.mrb[0].mxu0
        %v473 = vadd.f32 %v253, %v472
        %474 = vmatprep.mubr.f32.mxu0 0.0
        %475 = vmatmul.mubr.f32.gmra.mrb[0].mxu0 %v284
        %v476 = vpop.f32.mrb[0].mxu0
        %v477 = vadd.f32 %v249, %v476
        %v478 = vpop.f32.mrb[0].mxu0
        %v479 = vadd.f32 %v253, %v478
        %480 = vmatprep.mubr.f32.mxu0 0.0
        %481 = vmatmul.mubr.f32.gmra.mrb[0].mxu0 %v287
        %v482 = vpop.f32.mrb[0].mxu0
        %v483 = vadd.f32 %v249, %v482
        %v484 = vpop.f32.mrb[0].mxu0
        %v485 = vadd.f32 %v253, %v484
        %486 = vmatprep.mubr.f32.mxu0 0.0
        %487 = vmatmul.mubr.f32.gmra.mrb[0].mxu0 %v290
        %v488 = vpop.f32.mrb[0].mxu0
        %v489 = vadd.f32 %v249, %v488
        %v490 = vpop.f32.mrb[0].mxu0
        %v491 = vadd.f32 %v253, %v490
        %492 = vmatprep.mubr.f32.mxu0 0.0
        %493 = vmatmul.mubr.f32.gmra.mrb[0].mxu0 %v293
        %v494 = vpop.f32.mrb[0].mxu0
        %v495 = vadd.f32 %v249, %v494
        %v496 = vpop.f32.mrb[0].mxu0
        %v497 = vadd.f32 %v253, %v496
        %498 = vmatprep.mubr.f32.mxu0 0.0
        %499 = vmatmul.mubr.f32.gmra.mrb[0].mxu0 %v296
        %v500 = vpop.f32.mrb[0].mxu0
        %v501 = vadd.f32 %v249, %v500
        %v502 = vpop.f32.mrb[0].mxu0
        %v503 = vadd.f32 %v253, %v502
        %504 = vmatprep.mubr.f32.mxu0 0.0
        %505 = vmatmul.mubr.f32.gmra.mrb[0].mxu0 %v299
        %v506 = vpop.f32.mrb[0].mxu0
        %v507 = vadd.f32 %v249, %v506
        %v508 = vpop.f32.mrb[0].mxu0
        %v509 = vadd.f32 %v253, %v508
        %510 = vmatprep.mubr.f32.mxu0 0.0
        %511 = vmatmul.mubr.f32.gmra.mrb[0].mxu0 %v302
        %v512 = vpop.f32.mrb[0].mxu0
        %v513 = vadd.f32 %v249, %v512
        %v514 = vpop.f32.mrb[0].mxu0
        %v515 = vadd.f32 %v253, %v514
        %516 = vmatprep.mubr.f32.mxu0 0.0
        %517 = vmatmul.mubr.f32.gmra.mrb[0].mxu0 %v305
        %v518 = vpop.f32.mrb[0].mxu0
        %v519 = vadd.f32 %v249, %v518
        %v520 = vpop.f32.mrb[0].mxu0
        %v521 = vadd.f32 %v253, %v520
        %522 = vmatprep.mubr.f32.mxu0 0.0
        %523 = vmatmul.mubr.f32.gmra.mrb[0].mxu0 %v308
        %v524 = vpop.f32.mrb[0].mxu0
        %v525 = vadd.f32 %v249, %v524
        %v526 = vpop.f32.mrb[0].mxu0
        %v527 = vadd.f32 %v253, %v526
        %528 = vmatprep.mubr.f32.mxu0 0.0
        %529 = vmatmul.mubr.f32.gmra.mrb[0].mxu0 %v311
        %v530 = vpop.f32.mrb[0].mxu0
        %v531 = vadd.f32 %v249, %v530
        %v532 = vpop.f32.mrb[0].mxu0
        %v533 = vadd.f32 %v253, %v532
        %534 = vmatprep.mubr.f32.mxu0 0.0
        %535 = vmatmul.mubr.f32.gmra.mrb[0].mxu0 %v314
        %v536 = vpop.f32.mrb[0].mxu0
        %v537 = vadd.f32 %v249, %v536
        %v538 = vpop.f32.mrb[0].mxu0
        %v539 = vadd.f32 %v253, %v538
        %540 = vmatprep.mubr.f32.mxu0 0.0
        %541 = vmatmul.mubr.f32.gmra.mrb[0].mxu0 %v317
        %v542 = vpop.f32.mrb[0].mxu0
        %v543 = vadd.f32 %v249, %v542
        %v544 = vpop.f32.mrb[0].mxu0
        %v545 = vadd.f32 %v253, %v544
        %546 = vmatprep.mubr.f32.mxu0 0.0
        %547 = vmatmul.mubr.f32.gmra.mrb[0].mxu0 %v320
        %v548 = vpop.f32.mrb[0].mxu0
        %v549 = vadd.f32 %v249, %v548
        %v550 = vpop.f32.mrb[0].mxu0
        %v551 = vadd.f32 %v253, %v550
        %552 = vmatprep.mubr.f32.mxu0 0.0
        %553 = vmatmul.mubr.f32.gmra.mrb[0].mxu0 %v323
        %v554 = vpop.f32.mrb[0].mxu0
        %v555 = vadd.f32 %v249, %v554
        %v556 = vpop.f32.mrb[0].mxu0
        %v557 = vadd.f32 %v253, %v556
        %558 = vmatprep.mubr.f32.mxu0 0.0
        %559 = vmatmul.mubr.f32.gmra.mrb[0].mxu0 %v326
        %v560 = vpop.f32.mrb[0].mxu0
        %v561 = vadd.f32 %v249, %v560
        %v562 = vpop.f32.mrb[0].mxu0
        %v563 = vadd.f32 %v253, %v562
        %564 = vmatprep.mubr.f32.mxu0 0.0
        %565 = vmatmul.mubr.f32.gmra.mrb[0].mxu0 %v329
        %v566 = vpop.f32.mrb[0].mxu0
        %v567 = vadd.f32 %v249, %v566
        %v568 = vpop.f32.mrb[0].mxu0
        %v569 = vadd.f32 %v253, %v568
        %570 = vmatprep.mubr.f32.mxu0 0.0
        %571 = vmatmul.mubr.f32.gmra.mrb[0].mxu0 %v332
        %v572 = vpop.f32.mrb[0].mxu0
        %v573 = vadd.f32 %v249, %v572
        %v574 = vpop.f32.mrb[0].mxu0
        %v575 = vadd.f32 %v253, %v574
        %576 = vmatprep.mubr.f32.mxu0 0.0
        %577 = vmatmul.mubr.f32.gmra.mrb[0].mxu0 %v335
        %v578 = vpop.f32.mrb[0].mxu0
        %v579 = vadd.f32 %v249, %v578
        %v580 = vpop.f32.mrb[0].mxu0
        %v581 = vadd.f32 %v253, %v580
        %582 = vmatprep.mubr.f32.mxu0 0.0
        %583 = vmatmul.mubr.f32.gmra.mrb[0].mxu0 %v338
        %v584 = vpop.f32.mrb[0].mxu0
        %v585 = vadd.f32 %v249, %v584
        %v586 = vpop.f32.mrb[0].mxu0
        %v587 = vadd.f32 %v253, %v586
        %588 = vmatprep.mubr.f32.mxu0 0.0
        %589 = vmatmul.mubr.f32.gmra.mrb[0].mxu0 %v341
        %v590 = vpop.f32.mrb[0].mxu0
        %v591 = vadd.f32 %v249, %v590
        %v592 = vpop.f32.mrb[0].mxu0
        %v593 = vadd.f32 %v253, %v592
        %594 = vmatprep.mubr.f32.mxu0 0.0
        %595 = vmatmul.mubr.f32.gmra.mrb[0].mxu0 %v344
        %v596 = vpop.f32.mrb[0].mxu0
        %v597 = vadd.f32 %v249, %v596
        %v598 = vpop.f32.mrb[0].mxu0
        %v599 = vadd.f32 %v253, %v598
        %600 = vmatprep.mubr.f32.mxu0 0.0
        %601 = vmatmul.mubr.f32.gmra.mrb[0].mxu0 %v347
        %v602 = vpop.f32.mrb[0].mxu0
        %v603 = vadd.f32 %v249, %v602
        %v604 = vpop.f32.mrb[0].mxu0
        %v605 = vadd.f32 %v253, %v604
        %606 = vmatprep.mubr.f32.mxu0 0.0
        %607 = vmatmul.mubr.f32.gmra.mrb[0].mxu0 %v350
        %v608 = vpop.f32.mrb[0].mxu0
        %v609 = vadd.f32 %v249, %v608
        %v610 = vpop.f32.mrb[0].mxu0
        %v611 = vadd.f32 %v253, %v610
        %612 = vmatprep.mubr.f32.mxu0 0.0
        %613 = vmatmul.mubr.f32.gmra.mrb[0].mxu0 %v353
        %v614 = vpop.f32.mrb[0].mxu0
        %v615 = vadd.f32 %v249, %v614
        %v616 = vpop.f32.mrb[0].mxu0
        %v617 = vadd.f32 %v253, %v616
        %618 = vmatprep.mubr.f32.mxu0 0.0
        %619 = vmatmul.mubr.f32.gmra.mrb[0].mxu0 %v356
        %v620 = vpop.f32.mrb[0].mxu0
        %v621 = vadd.f32 %v249, %v620
        %v622 = vpop.f32.mrb[0].mxu0
        %v623 = vadd.f32 %v253, %v622
        %624 = vdwg.mxu0
        %625 = vmatprep.subr.mxu0 0.0
        %626 = vmatpush1.msra.mxu0 %v234
        %627 = vmatprep.subr.mxu0 0.0
        %628 = vmatpush1.msra.mxu0 %v237
        %629 = vmatprep.subr.mxu0 0.0
        %630 = vmatpush1.msra.mxu0 %v240
        %631 = vmatprep.subr.mxu0 0.0
        %632 = vmatpush1.msra.mxu0 %v366
        %633 = vmatprep.subr.mxu0 0.0
        %634 = vmatpush1.msra.mxu0 0.0
        %635 = vmatprep.subr.mxu0 0.0
        %636 = vmatpush1.msra.mxu0 0.0
        %637 = vmatprep.subr.mxu0 0.0
        %638 = vmatpush1.msra.mxu0 0.0
        %639 = vmatprep.subr.mxu0 0.0
        %640 = vmatpush1.msra.mxu0 0.0
        %641 = vmatprep.subr.mxu0 0.0
        %642 = vmatpush1.msra.mxu0 0.0
        %643 = vmatprep.subr.mxu0 0.0
        %644 = vmatpush1.msra.mxu0 0.0
        %645 = vmatprep.subr.mxu0 0.0
        %646 = vmatpush1.msra.mxu0 0.0
        %647 = vmatprep.subr.mxu0 0.0
        %648 = vmatpush1.msra.mxu0 0.0
        %649 = vmatprep.subr.mxu0 0.0
        %650 = vmatpush1.msra.mxu0 0.0
        %651 = vmatprep.subr.mxu0 0.0
        %652 = vmatpush1.msra.mxu0 0.0
        %653 = vmatprep.subr.mxu0 0.0
        %654 = vmatpush1.msra.mxu0 0.0
        %655 = vmatprep.subr.mxu0 0.0
        %656 = vmatpush1.msra.mxu0 0.0
        %657 = vmatprep.subr.mxu0 0.0
        %658 = vmatpush1.msra.mxu0 0.0
        %659 = vmatprep.subr.mxu0 0.0
        %660 = vmatpush1.msra.mxu0 0.0
        %661 = vmatprep.subr.mxu0 0.0
        %662 = vmatpush1.msra.mxu0 0.0
        %663 = vmatprep.subr.mxu0 0.0
        %664 = vmatpush1.msra.mxu0 0.0
        %665 = vmatprep.subr.mxu0 0.0
        %666 = vmatpush1.msra.mxu0 0.0
        %667 = vmatprep.subr.mxu0 0.0
        %668 = vmatpush1.msra.mxu0 0.0
        %669 = vmatprep.subr.mxu0 0.0
        %670 = vmatpush1.msra.mxu0 0.0
        %671 = vmatprep.subr.mxu0 0.0
        %672 = vmatpush1.msra.mxu0 0.0
        %673 = vmatprep.subr.mxu0 0.0
        %674 = vmatpush1.msra.mxu0 0.0
        %675 = vmatprep.subr.mxu0 0.0
        %676 = vmatpush1.msra.mxu0 0.0
        %677 = vmatprep.subr.mxu0 0.0
        %678 = vmatpush1.msra.mxu0 0.0
        %679 = vmatprep.subr.mxu0 0.0
        %680 = vmatpush1.msra.mxu0 0.0
        %681 = vmatprep.subr.mxu0 0.0
        %682 = vmatpush1.msra.mxu0 0.0
        %683 = vmatprep.subr.mxu0 0.0
        %684 = vmatpush1.msra.mxu0 0.0
        %685 = vmatprep.subr.mxu0 0.0
        %686 = vmatpush1.msra.mxu0 0.0
        %687 = vmatprep.subr.mxu0 0.0
        %688 = vmatpush1.msra.mxu0 0.0
        %689 = vmatprep.mubr.f32.mxu0 0.0
        %690 = vmatmul.mubr.f32.gmra.mrb[0].mxu0 %v263
        %v691 = vpop.f32.mrb[0].mxu0
        %v692 = vadd.f32 %v257, %v691
        %v693 = vpop.f32.mrb[0].mxu0
        %694 = vmatprep.mubr.f32.mxu0 0.0
        %695 = vmatmul.mubr.f32.gmra.mrb[0].mxu0 %v266
        %v696 = vpop.f32.mrb[0].mxu0
        %v697 = vadd.f32 %v257, %v696
        %v698 = vpop.f32.mrb[0].mxu0
        %699 = vmatprep.mubr.f32.mxu0 0.0
        %700 = vmatmul.mubr.f32.gmra.mrb[0].mxu0 %v269
        %v701 = vpop.f32.mrb[0].mxu0
        %v702 = vadd.f32 %v257, %v701
        %v703 = vpop.f32.mrb[0].mxu0
        %704 = vmatprep.mubr.f32.mxu0 0.0
        %705 = vmatmul.mubr.f32.gmra.mrb[0].mxu0 %v272
        %v706 = vpop.f32.mrb[0].mxu0
        %v707 = vadd.f32 %v257, %v706
        %v708 = vpop.f32.mrb[0].mxu0
        %709 = vmatprep.mubr.f32.mxu0 0.0
        %710 = vmatmul.mubr.f32.gmra.mrb[0].mxu0 %v275
        %v711 = vpop.f32.mrb[0].mxu0
        %v712 = vadd.f32 %v257, %v711
        %v713 = vpop.f32.mrb[0].mxu0
        %714 = vmatprep.mubr.f32.mxu0 0.0
        %715 = vmatmul.mubr.f32.gmra.mrb[0].mxu0 %v278
        %v716 = vpop.f32.mrb[0].mxu0
        %v717 = vadd.f32 %v257, %v716
        %v718 = vpop.f32.mrb[0].mxu0
        %719 = vmatprep.mubr.f32.mxu0 0.0
        %720 = vmatmul.mubr.f32.gmra.mrb[0].mxu0 %v281
        %v721 = vpop.f32.mrb[0].mxu0
        %v722 = vadd.f32 %v257, %v721
        %v723 = vpop.f32.mrb[0].mxu0
        %724 = vmatprep.mubr.f32.mxu0 0.0
        %725 = vmatmul.mubr.f32.gmra.mrb[0].mxu0 %v284
        %v726 = vpop.f32.mrb[0].mxu0
        %v727 = vadd.f32 %v257, %v726
        %v728 = vpop.f32.mrb[0].mxu0
        %729 = vmatprep.mubr.f32.mxu0 0.0
        %730 = vmatmul.mubr.f32.gmra.mrb[0].mxu0 %v287
        %v731 = vpop.f32.mrb[0].mxu0
        %v732 = vadd.f32 %v257, %v731
        %v733 = vpop.f32.mrb[0].mxu0
        %734 = vmatprep.mubr.f32.mxu0 0.0
        %735 = vmatmul.mubr.f32.gmra.mrb[0].mxu0 %v290
        %v736 = vpop.f32.mrb[0].mxu0
        %v737 = vadd.f32 %v257, %v736
        %v738 = vpop.f32.mrb[0].mxu0
        %739 = vmatprep.mubr.f32.mxu0 0.0
        %740 = vmatmul.mubr.f32.gmra.mrb[0].mxu0 %v293
        %v741 = vpop.f32.mrb[0].mxu0
        %v742 = vadd.f32 %v257, %v741
        %v743 = vpop.f32.mrb[0].mxu0
        %744 = vmatprep.mubr.f32.mxu0 0.0
        %745 = vmatmul.mubr.f32.gmra.mrb[0].mxu0 %v296
        %v746 = vpop.f32.mrb[0].mxu0
        %v747 = vadd.f32 %v257, %v746
        %v748 = vpop.f32.mrb[0].mxu0
        %749 = vmatprep.mubr.f32.mxu0 0.0
        %750 = vmatmul.mubr.f32.gmra.mrb[0].mxu0 %v299
        %v751 = vpop.f32.mrb[0].mxu0
        %v752 = vadd.f32 %v257, %v751
        %v753 = vpop.f32.mrb[0].mxu0
        %754 = vmatprep.mubr.f32.mxu0 0.0
        %755 = vmatmul.mubr.f32.gmra.mrb[0].mxu0 %v302
        %v756 = vpop.f32.mrb[0].mxu0
        %v757 = vadd.f32 %v257, %v756
        %v758 = vpop.f32.mrb[0].mxu0
        %759 = vmatprep.mubr.f32.mxu0 0.0
        %760 = vmatmul.mubr.f32.gmra.mrb[0].mxu0 %v305
        %v761 = vpop.f32.mrb[0].mxu0
        %v762 = vadd.f32 %v257, %v761
        %v763 = vpop.f32.mrb[0].mxu0
        %764 = vmatprep.mubr.f32.mxu0 0.0
        %765 = vmatmul.mubr.f32.gmra.mrb[0].mxu0 %v308
        %v766 = vpop.f32.mrb[0].mxu0
        %v767 = vadd.f32 %v257, %v766
        %v768 = vpop.f32.mrb[0].mxu0
        %769 = vmatprep.mubr.f32.mxu0 0.0
        %770 = vmatmul.mubr.f32.gmra.mrb[0].mxu0 %v311
        %v771 = vpop.f32.mrb[0].mxu0
        %v772 = vadd.f32 %v257, %v771
        %v773 = vpop.f32.mrb[0].mxu0
        %774 = vmatprep.mubr.f32.mxu0 0.0
        %775 = vmatmul.mubr.f32.gmra.mrb[0].mxu0 %v314
        %v776 = vpop.f32.mrb[0].mxu0
        %v777 = vadd.f32 %v257, %v776
        %v778 = vpop.f32.mrb[0].mxu0
        %779 = vmatprep.mubr.f32.mxu0 0.0
        %780 = vmatmul.mubr.f32.gmra.mrb[0].mxu0 %v317
        %v781 = vpop.f32.mrb[0].mxu0
        %v782 = vadd.f32 %v257, %v781
        %v783 = vpop.f32.mrb[0].mxu0
        %784 = vmatprep.mubr.f32.mxu0 0.0
        %785 = vmatmul.mubr.f32.gmra.mrb[0].mxu0 %v320
        %v786 = vpop.f32.mrb[0].mxu0
        %v787 = vadd.f32 %v257, %v786
        %v788 = vpop.f32.mrb[0].mxu0
        %789 = vmatprep.mubr.f32.mxu0 0.0
        %790 = vmatmul.mubr.f32.gmra.mrb[0].mxu0 %v323
        %v791 = vpop.f32.mrb[0].mxu0
        %v792 = vadd.f32 %v257, %v791
        %v793 = vpop.f32.mrb[0].mxu0
        %794 = vmatprep.mubr.f32.mxu0 0.0
        %795 = vmatmul.mubr.f32.gmra.mrb[0].mxu0 %v326
        %v796 = vpop.f32.mrb[0].mxu0
        %v797 = vadd.f32 %v257, %v796
        %v798 = vpop.f32.mrb[0].mxu0
        %799 = vmatprep.mubr.f32.mxu0 0.0
        %800 = vmatmul.mubr.f32.gmra.mrb[0].mxu0 %v329
        %v801 = vpop.f32.mrb[0].mxu0
        %v802 = vadd.f32 %v257, %v801
        %v803 = vpop.f32.mrb[0].mxu0
        %804 = vmatprep.mubr.f32.mxu0 0.0
        %805 = vmatmul.mubr.f32.gmra.mrb[0].mxu0 %v332
        %v806 = vpop.f32.mrb[0].mxu0
        %v807 = vadd.f32 %v257, %v806
        %v808 = vpop.f32.mrb[0].mxu0
        %809 = vmatprep.mubr.f32.mxu0 0.0
        %810 = vmatmul.mubr.f32.gmra.mrb[0].mxu0 %v335
        %v811 = vpop.f32.mrb[0].mxu0
        %v812 = vadd.f32 %v257, %v811
        %v813 = vpop.f32.mrb[0].mxu0
        %814 = vmatprep.mubr.f32.mxu0 0.0
        %815 = vmatmul.mubr.f32.gmra.mrb[0].mxu0 %v338
        %v816 = vpop.f32.mrb[0].mxu0
        %v817 = vadd.f32 %v257, %v816
        %v818 = vpop.f32.mrb[0].mxu0
        %819 = vmatprep.mubr.f32.mxu0 0.0
        %820 = vmatmul.mubr.f32.gmra.mrb[0].mxu0 %v341
        %v821 = vpop.f32.mrb[0].mxu0
        %v822 = vadd.f32 %v257, %v821
        %v823 = vpop.f32.mrb[0].mxu0
        %824 = vmatprep.mubr.f32.mxu0 0.0
        %825 = vmatmul.mubr.f32.gmra.mrb[0].mxu0 %v344
        %v826 = vpop.f32.mrb[0].mxu0
        %v827 = vadd.f32 %v257, %v826
        %v828 = vpop.f32.mrb[0].mxu0
        %829 = vmatprep.mubr.f32.mxu0 0.0
        %830 = vmatmul.mubr.f32.gmra.mrb[0].mxu0 %v347
        %v831 = vpop.f32.mrb[0].mxu0
        %v832 = vadd.f32 %v257, %v831
        %v833 = vpop.f32.mrb[0].mxu0
        %834 = vmatprep.mubr.f32.mxu0 0.0
        %835 = vmatmul.mubr.f32.gmra.mrb[0].mxu0 %v350
        %v836 = vpop.f32.mrb[0].mxu0
        %v837 = vadd.f32 %v257, %v836
        %v838 = vpop.f32.mrb[0].mxu0
        %839 = vmatprep.mubr.f32.mxu0 0.0
        %840 = vmatmul.mubr.f32.gmra.mrb[0].mxu0 %v353
        %v841 = vpop.f32.mrb[0].mxu0
        %v842 = vadd.f32 %v257, %v841
        %v843 = vpop.f32.mrb[0].mxu0
        %844 = vmatprep.mubr.f32.mxu0 0.0
        %845 = vmatmul.mubr.f32.gmra.mrb[0].mxu0 %v356
        %v846 = vpop.f32.mrb[0].mxu0
        %v847 = vadd.f32 %v257, %v846
        %v848 = vpop.f32.mrb[0].mxu0
        %849 = vdwg.mxu0
        %v850 = vmax.f32 %v435, 0.0
        %v851 = vmax.f32 %v437, 0.0
        %v852 = vmax.f32 %v692, 0.0
        %v853 = vmax.f32 %v441, 0.0
        %v854 = vmax.f32 %v443, 0.0
        %v855 = vmax.f32 %v697, 0.0
        %v856 = vmax.f32 %v447, 0.0
        %v857 = vmax.f32 %v449, 0.0
        %v858 = vmax.f32 %v702, 0.0
        %v859 = vmax.f32 %v453, 0.0
        %v860 = vmax.f32 %v455, 0.0
        %v861 = vmax.f32 %v707, 0.0
        %v862 = vmax.f32 %v459, 0.0
        %v863 = vmax.f32 %v461, 0.0
        %v864 = vmax.f32 %v712, 0.0
        %v865 = vmax.f32 %v465, 0.0
        %v866 = vmax.f32 %v467, 0.0
        %v867 = vmax.f32 %v717, 0.0
        %v868 = vmax.f32 %v471, 0.0
        %v869 = vmax.f32 %v473, 0.0
        %v870 = vmax.f32 %v722, 0.0
        %v871 = vmax.f32 %v477, 0.0
        %v872 = vmax.f32 %v479, 0.0
        %v873 = vmax.f32 %v727, 0.0
        %v874 = vmax.f32 %v483, 0.0
        %v875 = vmax.f32 %v485, 0.0
        %v876 = vmax.f32 %v732, 0.0
        %v877 = vmax.f32 %v489, 0.0
        %v878 = vmax.f32 %v491, 0.0
        %v879 = vmax.f32 %v737, 0.0
        %v880 = vmax.f32 %v495, 0.0
        %v881 = vmax.f32 %v497, 0.0
        %v882 = vmax.f32 %v742, 0.0
        %v883 = vmax.f32 %v501, 0.0
        %v884 = vmax.f32 %v503, 0.0
        %v885 = vmax.f32 %v747, 0.0
        %v886 = vmax.f32 %v507, 0.0
        %v887 = vmax.f32 %v509, 0.0
        %v888 = vmax.f32 %v752, 0.0
        %v889 = vmax.f32 %v513, 0.0
        %v890 = vmax.f32 %v515, 0.0
        %v891 = vmax.f32 %v757, 0.0
        %v892 = vmax.f32 %v519, 0.0
        %v893 = vmax.f32 %v521, 0.0
        %v894 = vmax.f32 %v762, 0.0
        %v895 = vmax.f32 %v525, 0.0
        %v896 = vmax.f32 %v527, 0.0
        %v897 = vmax.f32 %v767, 0.0
        %v898 = vmax.f32 %v531, 0.0
        %v899 = vmax.f32 %v533, 0.0
        %v900 = vmax.f32 %v772, 0.0
        %v901 = vmax.f32 %v537, 0.0
        %v902 = vmax.f32 %v539, 0.0
        %v903 = vmax.f32 %v777, 0.0
        %v904 = vmax.f32 %v543, 0.0
        %v905 = vmax.f32 %v545, 0.0
        %v906 = vmax.f32 %v782, 0.0
        %v907 = vmax.f32 %v549, 0.0
        %v908 = vmax.f32 %v551, 0.0
        %v909 = vmax.f32 %v787, 0.0
        %v910 = vmax.f32 %v555, 0.0
        %v911 = vmax.f32 %v557, 0.0
        %v912 = vmax.f32 %v792, 0.0
        %v913 = vmax.f32 %v561, 0.0
        %v914 = vmax.f32 %v563, 0.0
        %v915 = vmax.f32 %v797, 0.0
        %v916 = vmax.f32 %v567, 0.0
        %v917 = vmax.f32 %v569, 0.0
        %v918 = vmax.f32 %v802, 0.0
        %v919 = vmax.f32 %v573, 0.0
        %v920 = vmax.f32 %v575, 0.0
        %v921 = vmax.f32 %v807, 0.0
        %v922 = vmax.f32 %v579, 0.0
        %v923 = vmax.f32 %v581, 0.0
        %v924 = vmax.f32 %v812, 0.0
        %v925 = vmax.f32 %v585, 0.0
        %v926 = vmax.f32 %v587, 0.0
        %v927 = vmax.f32 %v817, 0.0
        %v928 = vmax.f32 %v591, 0.0
        %v929 = vmax.f32 %v593, 0.0
        %v930 = vmax.f32 %v822, 0.0
        %v931 = vmax.f32 %v597, 0.0
        %v932 = vmax.f32 %v599, 0.0
        %v933 = vmax.f32 %v827, 0.0
        %v934 = vmax.f32 %v603, 0.0
        %v935 = vmax.f32 %v605, 0.0
        %v936 = vmax.f32 %v832, 0.0
        %v937 = vmax.f32 %v609, 0.0
        %v938 = vmax.f32 %v611, 0.0
        %v939 = vmax.f32 %v837, 0.0
        %v940 = vmax.f32 %v615, 0.0
        %v941 = vmax.f32 %v617, 0.0
        %v942 = vmax.f32 %v842, 0.0
        %v943 = vmax.f32 %v621, 0.0
        %v944 = vmax.f32 %v623, 0.0
        %v945 = vmax.f32 %v847, 0.0
        %946 = vst [vmem:[%s188] sm:$0xff] %v850
        %947 = vst [vmem:[%s188 + $0x8] sm:$0xff] %v851
        %948 = vst [vmem:[%s188 + $0x10] sm:$0xff] %v852
        %949 = vst [vmem:[%s188 + $0x18] sm:$0xff] %v853
        %950 = vst [vmem:[%s188 + $0x20] sm:$0xff] %v854
        %951 = vst [vmem:[%s188 + $0x28] sm:$0xff] %v855
        %952 = vst [vmem:[%s188 + $0x30] sm:$0xff] %v856
        %953 = vst [vmem:[%s188 + $0x38] sm:$0xff] %v857
        %954 = vst [vmem:[%s188 + $0x40] sm:$0xff] %v858
        %955 = vst [vmem:[%s188 + $0x48] sm:$0xff] %v859
        %956 = vst [vmem:[%s188 + $0x50] sm:$0xff] %v860
        %957 = vst [vmem:[%s188 + $0x58] sm:$0xff] %v861
        %958 = vst [vmem:[%s188 + $0x60] sm:$0xff] %v862
        %959 = vst [vmem:[%s188 + $0x68] sm:$0xff] %v863
        %960 = vst [vmem:[%s188 + $0x70] sm:$0xff] %v864
        %961 = vst [vmem:[%s188 + $0x78] sm:$0xff] %v865
        %962 = vst [vmem:[%s188 + $0x80] sm:$0xff] %v866
        %963 = vst [vmem:[%s188 + $0x88] sm:$0xff] %v867
        %964 = vst [vmem:[%s188 + $0x90] sm:$0xff] %v868
        %965 = vst [vmem:[%s188 + $0x98] sm:$0xff] %v869
        %966 = vst [vmem:[%s188 + $0xa0] sm:$0xff] %v870
        %967 = vst [vmem:[%s188 + $0xa8] sm:$0xff] %v871
        %968 = vst [vmem:[%s188 + $0xb0] sm:$0xff] %v872
        %969 = vst [vmem:[%s188 + $0xb8] sm:$0xff] %v873
        %970 = vst [vmem:[%s188 + $0xc0] sm:$0xff] %v874
        %971 = vst [vmem:[%s188 + $0xc8] sm:$0xff] %v875
        %972 = vst [vmem:[%s188 + $0xd0] sm:$0xff] %v876
        %973 = vst [vmem:[%s188 + $0xd8] sm:$0xff] %v877
        %974 = vst [vmem:[%s188 + $0xe0] sm:$0xff] %v878
        %975 = vst [vmem:[%s188 + $0xe8] sm:$0xff] %v879
        %976 = vst [vmem:[%s188 + $0xf0] sm:$0xff] %v880
        %977 = vst [vmem:[%s188 + $0xf8] sm:$0xff] %v881
        %978 = vst [vmem:[%s188 + $0x100] sm:$0xff] %v882
        %979 = vst [vmem:[%s188 + $0x108] sm:$0xff] %v883
        %980 = vst [vmem:[%s188 + $0x110] sm:$0xff] %v884
        %981 = vst [vmem:[%s188 + $0x118] sm:$0xff] %v885
        %982 = vst [vmem:[%s188 + $0x120] sm:$0xff] %v886
        %983 = vst [vmem:[%s188 + $0x128] sm:$0xff] %v887
        %984 = vst [vmem:[%s188 + $0x130] sm:$0xff] %v888
        %985 = vst [vmem:[%s188 + $0x138] sm:$0xff] %v889
        %986 = vst [vmem:[%s188 + $0x140] sm:$0xff] %v890
        %987 = vst [vmem:[%s188 + $0x148] sm:$0xff] %v891
        %988 = vst [vmem:[%s188 + $0x150] sm:$0xff] %v892
        %989 = vst [vmem:[%s188 + $0x158] sm:$0xff] %v893
        %990 = vst [vmem:[%s188 + $0x160] sm:$0xff] %v894
        %991 = vst [vmem:[%s188 + $0x168] sm:$0xff] %v895
        %992 = vst [vmem:[%s188 + $0x170] sm:$0xff] %v896
        %993 = vst [vmem:[%s188 + $0x178] sm:$0xff] %v897
        %994 = vst [vmem:[%s188 + $0x180] sm:$0xff] %v898
        %995 = vst [vmem:[%s188 + $0x188] sm:$0xff] %v899
        %996 = vst [vmem:[%s188 + $0x190] sm:$0xff] %v900
        %997 = vst [vmem:[%s188 + $0x198] sm:$0xff] %v901
        %998 = vst [vmem:[%s188 + $0x1a0] sm:$0xff] %v902
        %999 = vst [vmem:[%s188 + $0x1a8] sm:$0xff] %v903
        %1000 = vst [vmem:[%s188 + $0x1b0] sm:$0xff] %v904
        %1001 = vst [vmem:[%s188 + $0x1b8] sm:$0xff] %v905
        %1002 = vst [vmem:[%s188 + $0x1c0] sm:$0xff] %v906
        %1003 = vst [vmem:[%s188 + $0x1c8] sm:$0xff] %v907
        %1004 = vst [vmem:[%s188 + $0x1d0] sm:$0xff] %v908
        %1005 = vst [vmem:[%s188 + $0x1d8] sm:$0xff] %v909
        %1006 = vst [vmem:[%s188 + $0x1e0] sm:$0xff] %v910
        %1007 = vst [vmem:[%s188 + $0x1e8] sm:$0xff] %v911
        %1008 = vst [vmem:[%s188 + $0x1f0] sm:$0xff] %v912
        %1009 = vst [vmem:[%s188 + $0x1f8] sm:$0xff] %v913
        %1010 = vst [vmem:[%s188 + $0x200] sm:$0xff] %v914
        %1011 = vst [vmem:[%s188 + $0x208] sm:$0xff] %v915
        %1012 = vst [vmem:[%s188 + $0x210] sm:$0xff] %v916
        %1013 = vst [vmem:[%s188 + $0x218] sm:$0xff] %v917
        %1014 = vst [vmem:[%s188 + $0x220] sm:$0xff] %v918
        %1015 = vst [vmem:[%s188 + $0x228] sm:$0xff] %v919
        %1016 = vst [vmem:[%s188 + $0x230] sm:$0xff] %v920
        %1017 = vst [vmem:[%s188 + $0x238] sm:$0xff] %v921
        %1018 = vst [vmem:[%s188 + $0x240] sm:$0xff] %v922
        %1019 = vst [vmem:[%s188 + $0x248] sm:$0xff] %v923
        %1020 = vst [vmem:[%s188 + $0x250] sm:$0xff] %v924
        %1021 = vst [vmem:[%s188 + $0x258] sm:$0xff] %v925
        %1022 = vst [vmem:[%s188 + $0x260] sm:$0xff] %v926
        %1023 = vst [vmem:[%s188 + $0x268] sm:$0xff] %v927
        %1024 = vst [vmem:[%s188 + $0x270] sm:$0xff] %v928
        %1025 = vst [vmem:[%s188 + $0x278] sm:$0xff] %v929
        %1026 = vst [vmem:[%s188 + $0x280] sm:$0xff] %v930
        %1027 = vst [vmem:[%s188 + $0x288] sm:$0xff] %v931
        %1028 = vst [vmem:[%s188 + $0x290] sm:$0xff] %v932
        %1029 = vst [vmem:[%s188 + $0x298] sm:$0xff] %v933
        %1030 = vst [vmem:[%s188 + $0x2a0] sm:$0xff] %v934
        %1031 = vst [vmem:[%s188 + $0x2a8] sm:$0xff] %v935
        %1032 = vst [vmem:[%s188 + $0x2b0] sm:$0xff] %v936
        %1033 = vst [vmem:[%s188 + $0x2b8] sm:$0xff] %v937
        %1034 = vst [vmem:[%s188 + $0x2c0] sm:$0xff] %v938
        %1035 = vst [vmem:[%s188 + $0x2c8] sm:$0xff] %v939
        %1036 = vst [vmem:[%s188 + $0x2d0] sm:$0xff] %v940
        %1037 = vst [vmem:[%s188 + $0x2d8] sm:$0xff] %v941
        %1038 = vst [vmem:[%s188 + $0x2e0] sm:$0xff] %v942
        %1039 = vst [vmem:[%s188 + $0x2e8] sm:$0xff] %v943
        %1040 = vst [vmem:[%s188 + $0x2f0] sm:$0xff] %v944
        %1041 = vst [vmem:[%s188 + $0x2f8] sm:$0xff] %v945
        %s1042 = sand.u32 %s109, 1
        %s1043 = scalar_lea.sflag [#allocation3], %s1042
        %s1044 = sand.u32 %s109, 1
        %s1045 = smul.addr %s1044, 768
        %s1046 = scalar_lea.vmem [#allocation2], %s1045
        // Predicated region
        $region33: #{tpu_custom_call.1} parent=31 // pred_check
          %p1047 = pneg %p119
        $region34: #{tpu_custom_call.1} parent=31 // pred_check_branch
          %1049 = sbr.rel (%p1047) target = $region36
        $region35: #{tpu_custom_call.1} parent=31 // pred_region
          %s1050 = smul.u32 32, %s22
          %s1052 = ssub.s32 12288, 12288
          %1053 = vsyncadd %s1043, %s1052
          %s1054 = smul.addr %s1050, 3
          %s1055 = smul.addr %s21, 96
          %s1056 = sadd.s32 %s1054, %s1055
          %s1057 = smul.addr %s1056, 128
          %s1058 = scalar_lea.hbm %s3, %s1057
          %s1059 = sshll.u32 %s1046, 4
          %s1060 = int_to_ptr.vmem [resolvable:$true] %s1059
          %1065 = dma.vmem_to_hbm [thread:$0]  %s1060, 12288, %s1058, %s1043, 384, 384, 24
        $region36: #{tpu_custom_call.1} parent=31 // pred_fallthru
          _
      $region32: #{tpu_custom_call.1} parent=5 // pred_fallthru
        _
      %p1066 = scmp.le.s32.totalorder 2, %s12
      // Predicated region
      $region37: #{tpu_custom_call.1} parent=5 // pred_check
        %p1067 = pneg %p1066
      $region38: #{tpu_custom_call.1} parent=5 // pred_check_branch
        %1069 = sbr.rel (%p1067) target = $region40
      $region39: #{tpu_custom_call.1} parent=5 // pred_region
        %s1070 = ssub.s32 %s12, 2
        // Predicated region
        $region41: #{tpu_custom_call.1} parent=39 // pred_check
          %p1071 = pneg %p125
        $region42: #{tpu_custom_call.1} parent=39 // pred_check_branch
          %1073 = sbr.rel (%p1071) target = $region44
        $region43: #{tpu_custom_call.1} parent=39 // pred_region
          %s1074 = sand.u32 %s110, 1
          %s1075 = scalar_lea.sflag [#allocation3], %s1074
          %s1076 = sand.u32 %s110, 1
          %s1077 = smul.addr %s1076, 768
          %s1078 = scalar_lea.vmem [#allocation2], %s1077
          %1079 = dma.done %s1075, 12288
        $region44: #{tpu_custom_call.1} parent=39 // pred_fallthru
          _
      $region40: #{tpu_custom_call.1} parent=5 // pred_fallthru
        _
    $region6: #{tpu_custom_call.1} parent=1 // loop_footer
      %s16 = sadd.s32 1, %s12
    $region7: #{tpu_custom_call.1} parent=1 // loop_footer_branch
      %11 = sbr.rel target = $region3
    $region8: #{tpu_custom_call.1} parent=1 // loop_exit
      _
    %1080 = vsyncpa [#allocation3], 1
    %s1081 = scalar_lea.sflag [#allocation3], 1
    %1082 = vsyncpa %s1081, 1

</llo_original>
